<compile_context>
chip_gen: v5e
topology: v5e:2x2
jax: 0.10.0
libtpu: 0.0.40
codegen_flags: <defaults>
</compile_context>

<pallas_src>
import functools

import jax
import jax.numpy as jnp
from jax.experimental import pallas as pl
from jax.experimental.pallas import tpu as pltpu


def _round_up(x, m):
    return ((x + m - 1) // m) * m


def _elu(x):
    # F.elu(alpha=1).  One EUP transcendental per element; the min-clamp keeps
    # the untaken branch finite, x > 0 selects the exact identity branch.
    neg = jnp.minimum(x, 0.0)
    return jnp.where(x > 0, x, jnp.exp(neg) - 1.0)


def q_global_kernel(A, Hm, HP, AHP,
                    x_ref,
                    wc1_ref, bc1_ref, wc2_ref, bc2_ref,
                    sred1_ref, r2_ref, sred_ref,
                    out_ref):
    f32 = jnp.float32
    bf16 = jnp.bfloat16
    AH = A * Hm

    x = x_ref[...]                                      # (TN, E + A), bf16: [state | q]

    # ---- fused hypernet layer 1 + q replication: one MXU pass -> [h | q_rep | b1] ----
    z1 = jnp.dot(x, wc1_ref[...], preferred_element_type=f32) + bc1_ref[...]
    h = jnp.maximum(z1[:, :HP], 0.0).astype(bf16)       # ReLU'd hypernet hidden (pad lanes are 0)
    q_rep = z1[:, HP:HP + AH]                           # lane a*Hm+h -> q[a]      (f32, pre-ReLU)
    b1 = z1[:, HP + AHP:HP + AHP + Hm]                  # (TN, Hm)                 (f32, pre-ReLU)

    # ---- fused hypernet layer 2 (block-diagonal): -> [w1 | w2_perm | b2] ----
    z2 = jnp.dot(h, wc2_ref[...], preferred_element_type=f32) + bc2_ref[...]
    w1 = jnp.abs(z2[:, :AH])                            # lane a*Hm+h -> |W1[a, h]|
    w2 = jnp.abs(z2[:, AHP:AHP + AH])                   # lane a*Hm+h -> |W2[h, a]| (pre-permuted)
    b2 = z2[:, 2 * AHP:2 * AHP + A]                     # (TN, A)

    # ---- mixing layer 1: hid[h] = ELU(sum_a q[a]*W1[a,h] + b1[h]) ----
    # full-lane VPU multiply, then MXU segment-sum over agents (no lane-slice loop).
    prod1 = (q_rep * w1).astype(bf16)
    hid = _elu(jnp.dot(prod1, sred1_ref[...], preferred_element_type=f32) + b1)

    # ---- mixing layer 2: out[a] = sum_h hid[h]*W2[h,a] + b2[a] ----
    hid_rep = jnp.dot(hid.astype(bf16), r2_ref[...], preferred_element_type=f32)
    prod2 = (hid_rep * w2).astype(bf16)
    out_ref[...] = jnp.dot(prod2, sred_ref[...], preferred_element_type=f32) + b2


def _pack_mixer_params(params, A, E, Hm, Hh, HP, AHP):
    """Fuse the hypernet Linears (+ q replication) into two bf16 matmul weights
    plus constant 0/1 mixing matrices, with 128-lane-aligned segments."""
    f32 = jnp.float32
    bf16 = jnp.bfloat16
    AH = A * Hm
    W1T = HP + AHP + Hm          # z1 width: [h(3Hh, pad->HP) | q_rep(AH, pad->AHP) | b1(Hm)]
    W2T = 2 * AHP + A            # z2 width: [w1(AH, pad->AHP) | w2p(AH, pad->AHP) | b2(A)]

    # --- layer-1 fusion over xin = [s | q] ---
    wc1 = jnp.zeros((E + A, W1T), f32)
    wc1 = wc1.at[:E, 0:Hh].set(params["w1a"])
    wc1 = wc1.at[:E, Hh:2 * Hh].set(params["w2a"])
    wc1 = wc1.at[:E, 2 * Hh:3 * Hh].set(params["wb2a"])
    wc1 = wc1.at[:E, HP + AHP:HP + AHP + Hm].set(params["wb1"])
    r1 = jnp.kron(jnp.eye(A, dtype=f32), jnp.ones((1, Hm), f32))      # q -> lane a*Hm+h
    wc1 = wc1.at[E:E + A, HP:HP + AH].set(r1)

    bc1 = jnp.zeros((1, W1T), f32)
    bc1 = bc1.at[:, 0:Hh].set(params["b1a"])
    bc1 = bc1.at[:, Hh:2 * Hh].set(params["b2a"])
    bc1 = bc1.at[:, 2 * Hh:3 * Hh].set(params["bb2a"])
    bc1 = bc1.at[:, HP + AHP:HP + AHP + Hm].set(params["bb1"])

    # --- layer-2 fusion (block diagonal) ---
    # permute hyper_w2 output columns from (h, a) row-major to (a, h) row-major
    k = jnp.arange(AH)
    perm = (k % Hm) * A + (k // Hm)
    w2b_p = params["w2b"][:, perm]
    b2b_p = params["b2b"][:, perm]

    wc2 = jnp.zeros((HP, W2T), f32)
    wc2 = wc2.at[0:Hh, 0:AH].set(params["w1b"])
    wc2 = wc2.at[Hh:2 * Hh, AHP:AHP + AH].set(w2b_p)
    wc2 = wc2.at[2 * Hh:3 * Hh, 2 * AHP:2 * AHP + A].set(params["wb2b"])

    bc2 = jnp.zeros((1, W2T), f32)
    bc2 = bc2.at[:, 0:AH].set(params["b1b"])
    bc2 = bc2.at[:, AHP:AHP + AH].set(b2b_p)
    bc2 = bc2.at[:, 2 * AHP:2 * AHP + A].set(params["bb2b"])

    # --- constant 0/1 replication / segment-sum matrices (exact in bf16) ---
    sred1 = jnp.tile(jnp.eye(Hm, dtype=f32), (A, 1))                  # (AH, Hm): sum over agents
    r2 = jnp.tile(jnp.eye(Hm, dtype=f32), (1, A))                     # (Hm, AH): hid -> lane a*Hm+h
    sred = jnp.kron(jnp.eye(A, dtype=f32), jnp.ones((Hm, 1), f32))    # (AH, A):  sum over h

    bf = lambda a: a.astype(bf16)
    # biases stay f32 (added to the f32 MXU accumulators); matmul operands -> bf16.
    return bf(wc1), bc1, bf(wc2), bc2, bf(sred1), bf(r2), bf(sred)


def q_global_forward(agent_q_individual, states, params, *,
                     num_q_inps, cent_obs_dim, hidden_dim, hypernet_hidden_dim,
                     tile_n=2048):
    """Pallas-backed forward. Returns (q_tot of shape (T, B, num_q_inps), None)."""
    A, E, Hm, Hh = num_q_inps, cent_obs_dim, hidden_dim, hypernet_hidden_dim
    B = agent_q_individual.shape[1]

    # glue (reshapes / slicing) stays in plain JAX, same as the torch .view calls
    states = states.reshape(-1, B, A, E).astype(jnp.float32)
    q = agent_q_individual.reshape(-1, B, A).astype(jnp.float32)
    T = states.shape[0]
    N = T * B
    s_flat = states[:, :, 0, :].reshape(N, E)
    q_flat = q.reshape(N, A)

    HP = _round_up(3 * Hh, 128)     # hypernet-hidden segment, padded to a 128-lane boundary
    AHP = _round_up(A * Hm, 128)    # per-agent-weight segment, padded to a 128-lane boundary
    wc1, bc1, wc2, bc2, sred1, r2, sred = _pack_mixer_params(params, A, E, Hm, Hh, HP, AHP)

    # Row tiling: multiple of 8 rows per grid step; aim for >= 2 grid steps so the
    # "parallel" axis can shard across both TensorCores on v7x.  For large N,
    # choose tile_n to divide N to avoid the pad copy below.
    n_r8 = _round_up(max(N, 1), 8)
    tn = min(tile_n, max(8, _round_up(pl.cdiv(n_r8, 2), 8)))
    n_pad = _round_up(N, tn)

    # One fused wrapper pass: bf16 cast + [state | q] concat (+ row pad if needed).
    xin = jnp.concatenate([s_flat, q_flat], axis=1).astype(jnp.bfloat16)   # (N, E+A)
    if n_pad != N:
        xin = jnp.pad(xin, ((0, n_pad - N), (0, 0)))

    kernel = functools.partial(q_global_kernel, A, Hm, HP, AHP)
    # NOTE: constant index_map keeps the weights VMEM-resident (no re-DMA between
    # consecutive steps); they are small enough that default double-buffering is fine.
    const_spec = lambda arr: pl.BlockSpec(arr.shape, lambda i: (0, 0))
    out = pl.pallas_call(
        kernel,
        out_shape=jax.ShapeDtypeStruct((n_pad, A), jnp.float32),
        grid=(n_pad // tn,),
        in_specs=[
            pl.BlockSpec((tn, E + A), lambda i: (i, 0)),
            const_spec(wc1), const_spec(bc1),
            const_spec(wc2), const_spec(bc2),
            const_spec(sred1), const_spec(r2), const_spec(sred),
        ],
        out_specs=pl.BlockSpec((tn, A), lambda i: (i, 0)),
        compiler_params=pltpu.CompilerParams(
            dimension_semantics=("parallel",),
            vmem_limit_bytes=48 * 1024 * 1024),
    )(xin, wc1, bc1, wc2, bc2, sred1, r2, sred)

    return out[:N].reshape(T, B, A), None


# ------------------------- deterministic parameter init -------------------------
def _xavier(key, fan_in, fan_out):
    limit = (6.0 / (fan_in + fan_out)) ** 0.5
    return jax.random.uniform(key, (fan_in, fan_out), jnp.float32, -limit, limit)


def init_params(key, cent_obs_dim, hypernet_hidden_dim, hidden_dim, num_q_inps):
    E, Hh, Hm, A = cent_obs_dim, hypernet_hidden_dim, hidden_dim, num_q_inps
    ks = jax.random.split(key, 8)
    z = lambda d: jnp.zeros((1, d), jnp.float32)   # torch init_ sets biases to 0
    return dict(
        # hyper_w1: Linear(E, Hh) -> ReLU -> Linear(Hh, Hm * A)
        w1a=_xavier(ks[0], E, Hh),  b1a=z(Hh),
        w1b=_xavier(ks[1], Hh, A * Hm), b1b=z(A * Hm),
        # hyper_w2
        w2a=_xavier(ks[2], E, Hh),  b2a=z(Hh),
        w2b=_xavier(ks[3], Hh, A * Hm), b2b=z(A * Hm),
        # hyper_b1: Linear(E, Hm)
        wb1=_xavier(ks[4], E, Hm),  bb1=z(Hm),
        # hyper_b2: Linear(E, Hh) -> ReLU -> Linear(Hh, A)
        wb2a=_xavier(ks[5], E, Hh), bb2a=z(Hh),
        wb2b=_xavier(ks[6], Hh, A), bb2b=z(A),
    )


# ------------------------------ pure-JAX reference ------------------------------
def q_global_reference(agent_q_individual, states, params, *, num_q_inps, cent_obs_dim, hidden_dim):
    A, E, Hm = num_q_inps, cent_obs_dim, hidden_dim
    B = agent_q_individual.shape[1]
    states = states.reshape(-1, B, A, E).astype(jnp.float32)
    q = agent_q_individual.reshape(-1, B, 1, 1, A).astype(jnp.float32)
    s0 = states[:, :, 0, :]
    relu = lambda x: jnp.maximum(x, 0.0)
    w1 = jnp.abs(relu(s0 @ params["w1a"] + params["b1a"]) @ params["w1b"] + params["b1b"])
    w2 = jnp.abs(relu(s0 @ params["w2a"] + params["b2a"]) @ params["w2b"] + params["b2b"])
    b1 = s0 @ params["wb1"] + params["bb1"]
    b2 = relu(s0 @ params["wb2a"] + params["bb2a"]) @ params["wb2b"] + params["bb2b"]
    T = states.shape[0]
    w1 = w1.reshape(T, B, 1, A, Hm)
    b1 = b1.reshape(T, B, 1, 1, Hm)
    w2 = w2.reshape(T, B, 1, Hm, A)
    b2 = b2.reshape(T, B, 1, 1, A)
    hidden = jax.nn.elu(jnp.matmul(q, w1) + b1)
    out = jnp.matmul(hidden, w2) + b2
    return out.reshape(T, B, A), None


if __name__ == "__main__":
    # small shapes consistent with the module
    T, B = 8, 2            # episode length x batch
    num_agents = 4         # == num_q_inps A
    cent_obs_dim = 32      # E
    hypernet_hidden_dim = 64
    mixer_hidden_dim = 32  # Hm

    key = jax.random.PRNGKey(0)
    k_q, k_s, _ = jax.random.split(key, 3)

    agent_q_individual = jax.random.normal(k_q, (T, B, num_agents), jnp.float32)
    # centralized state, flat per (t, b): num_q_inps * cent_obs_dim features
    states = jax.random.normal(k_s, (T, B, num_agents * cent_obs_dim), jnp.float32)

    params = init_params(jax.random.PRNGKey(42), cent_obs_dim,
                         hypernet_hidden_dim, mixer_hidden_dim, num_agents)

    q_tot, _ = q_global_forward(agent_q_individual, states, params,
                                num_q_inps=num_agents,
                                cent_obs_dim=cent_obs_dim,
                                hidden_dim=mixer_hidden_dim,
                                hypernet_hidden_dim=hypernet_hidden_dim)
    q_tot = jax.block_until_ready(q_tot)

    q_ref, _ = q_global_reference(agent_q_individual, states, params,
                                  num_q_inps=num_agents,
                                  cent_obs_dim=cent_obs_dim,
                                  hidden_dim=mixer_hidden_dim)

    # MXU operands are bf16 (f32 accumulation), so compare against the f32
    # reference at a bf16-appropriate tolerance.
    if not jnp.allclose(q_tot, q_ref, rtol=5e-2, atol=5e-2):
        raise AssertionError("Pallas kernel output does not match reference; "
                             f"max abs err = {float(jnp.max(jnp.abs(q_tot - q_ref)))}")

    assert q_tot.shape == (T, B, num_agents)
    print("KERNEL_OK")
</pallas_src>

<mosaic_0001>
module attributes {stable_mosaic.version = 11 : i64} {
  func.func @q_global_kernel(%arg0: i32, %arg1: memref<8x36xbf16, #tpu.memory_space<vmem>>, %arg2: memref<36x416xbf16, #tpu.memory_space<vmem>>, %arg3: memref<1x416xf32, #tpu.memory_space<vmem>>, %arg4: memref<256x260xbf16, #tpu.memory_space<vmem>>, %arg5: memref<1x260xf32, #tpu.memory_space<vmem>>, %arg6: memref<128x32xbf16, #tpu.memory_space<vmem>>, %arg7: memref<32x128xbf16, #tpu.memory_space<vmem>>, %arg8: memref<128x4xbf16, #tpu.memory_space<vmem>>, %arg9: memref<8x4xf32, #tpu.memory_space<vmem>>) attributes {dimension_semantics = [#tpu.dimension_semantics<parallel>], iteration_bounds = array<i64: 2>, scalar_prefetch = 0 : i64, scratch_operands = 0 : i64, tpu.core_type = #tpu.core_type<tc>, window_params = [{transform_indices = @transform_0, window_bounds = array<i64: 8, 36>}, {pipeline_mode = #tpu.pipeline_mode<synchronous>, transform_indices = @transform_1, window_bounds = array<i64: 36, 416>}, {pipeline_mode = #tpu.pipeline_mode<synchronous>, transform_indices = @transform_2, window_bounds = array<i64: 1, 416>}, {pipeline_mode = #tpu.pipeline_mode<synchronous>, transform_indices = @transform_3, window_bounds = array<i64: 256, 260>}, {pipeline_mode = #tpu.pipeline_mode<synchronous>, transform_indices = @transform_4, window_bounds = array<i64: 1, 260>}, {pipeline_mode = #tpu.pipeline_mode<synchronous>, transform_indices = @transform_5, window_bounds = array<i64: 128, 32>}, {pipeline_mode = #tpu.pipeline_mode<synchronous>, transform_indices = @transform_6, window_bounds = array<i64: 32, 128>}, {pipeline_mode = #tpu.pipeline_mode<synchronous>, transform_indices = @transform_7, window_bounds = array<i64: 128, 4>}, {transform_indices = @transform_8, window_bounds = array<i64: 8, 4>}]} {
    %c0 = arith.constant 0 : index
    %c0_0 = arith.constant 0 : index
    %0 = vector.load %arg1[%c0, %c0_0] : memref<8x36xbf16, #tpu.memory_space<vmem>>, vector<8x36xbf16>
    %c0_1 = arith.constant 0 : index
    %c0_2 = arith.constant 0 : index
    %1 = vector.load %arg2[%c0_1, %c0_2] : memref<36x416xbf16, #tpu.memory_space<vmem>>, vector<36x416xbf16>
    %cst = arith.constant dense<0.000000e+00> : vector<8x416xf32>
    %2 = tpu.matmul %0, %1, %cst {dimension_numbers = #tpu.dot_dimension_numbers<[1], [0], [0], [1], [0, 0, 1, 1], [], []>} : vector<8x36xbf16>, vector<36x416xbf16>, vector<8x416xf32> -> vector<8x416xf32>
    %c0_3 = arith.constant 0 : index
    %c0_4 = arith.constant 0 : index
    %3 = vector.load %arg3[%c0_3, %c0_4] : memref<1x416xf32, #tpu.memory_space<vmem>>, vector<1x416xf32>
    %4 = vector.broadcast %3 : vector<1x416xf32> to vector<8x416xf32>
    %5 = arith.addf %2, %4 : vector<8x416xf32>
    %6 = vector.extract_strided_slice %5 {offsets = [0, 0], sizes = [8, 256], strides = [1, 1]} : vector<8x416xf32> to vector<8x256xf32>
    %cst_5 = arith.constant 0.000000e+00 : f32
    %7 = vector.broadcast %cst_5 : f32 to vector<8x256xf32>
    %8 = arith.maximumf %6, %7 : vector<8x256xf32>
    %9 = arith.truncf %8 : vector<8x256xf32> to vector<8x256xbf16>
    %10 = vector.extract_strided_slice %5 {offsets = [0, 256], sizes = [8, 128], strides = [1, 1]} : vector<8x416xf32> to vector<8x128xf32>
    %11 = vector.extract_strided_slice %5 {offsets = [0, 384], sizes = [8, 32], strides = [1, 1]} : vector<8x416xf32> to vector<8x32xf32>
    %c0_6 = arith.constant 0 : index
    %c0_7 = arith.constant 0 : index
    %12 = vector.load %arg4[%c0_6, %c0_7] : memref<256x260xbf16, #tpu.memory_space<vmem>>, vector<256x260xbf16>
    %cst_8 = arith.constant dense<0.000000e+00> : vector<8x260xf32>
    %13 = tpu.matmul %9, %12, %cst_8 {dimension_numbers = #tpu.dot_dimension_numbers<[1], [0], [0], [1], [0, 0, 1, 1], [], []>} : vector<8x256xbf16>, vector<256x260xbf16>, vector<8x260xf32> -> vector<8x260xf32>
    %c0_9 = arith.constant 0 : index
    %c0_10 = arith.constant 0 : index
    %14 = vector.load %arg5[%c0_9, %c0_10] : memref<1x260xf32, #tpu.memory_space<vmem>>, vector<1x260xf32>
    %15 = vector.broadcast %14 : vector<1x260xf32> to vector<8x260xf32>
    %16 = arith.addf %13, %15 : vector<8x260xf32>
    %17 = vector.extract_strided_slice %16 {offsets = [0, 0], sizes = [8, 128], strides = [1, 1]} : vector<8x260xf32> to vector<8x128xf32>
    %18 = math.absf %17 : vector<8x128xf32>
    %19 = vector.extract_strided_slice %16 {offsets = [0, 128], sizes = [8, 128], strides = [1, 1]} : vector<8x260xf32> to vector<8x128xf32>
    %20 = math.absf %19 : vector<8x128xf32>
    %21 = vector.extract_strided_slice %16 {offsets = [0, 256], sizes = [8, 4], strides = [1, 1]} : vector<8x260xf32> to vector<8x4xf32>
    %22 = arith.mulf %10, %18 : vector<8x128xf32>
    %23 = arith.truncf %22 : vector<8x128xf32> to vector<8x128xbf16>
    %c0_11 = arith.constant 0 : index
    %c0_12 = arith.constant 0 : index
    %24 = vector.load %arg6[%c0_11, %c0_12] : memref<128x32xbf16, #tpu.memory_space<vmem>>, vector<128x32xbf16>
    %cst_13 = arith.constant dense<0.000000e+00> : vector<8x32xf32>
    %25 = tpu.matmul %23, %24, %cst_13 {dimension_numbers = #tpu.dot_dimension_numbers<[1], [0], [0], [1], [0, 0, 1, 1], [], []>} : vector<8x128xbf16>, vector<128x32xbf16>, vector<8x32xf32> -> vector<8x32xf32>
    %26 = arith.addf %25, %11 : vector<8x32xf32>
    %cst_14 = arith.constant 0.000000e+00 : f32
    %27 = vector.broadcast %cst_14 : f32 to vector<8x32xf32>
    %28 = arith.minimumf %26, %27 : vector<8x32xf32>
    %cst_15 = arith.constant 0.000000e+00 : f32
    %29 = vector.broadcast %cst_15 : f32 to vector<8x32xf32>
    %30 = arith.cmpf ogt, %26, %29 : vector<8x32xf32>
    %31 = math.exp %28 : vector<8x32xf32>
    %cst_16 = arith.constant 1.000000e+00 : f32
    %32 = vector.broadcast %cst_16 : f32 to vector<8x32xf32>
    %33 = arith.subf %31, %32 : vector<8x32xf32>
    %34 = arith.select %30, %26, %33 : vector<8x32xi1>, vector<8x32xf32>
    %35 = arith.truncf %34 : vector<8x32xf32> to vector<8x32xbf16>
    %c0_17 = arith.constant 0 : index
    %c0_18 = arith.constant 0 : index
    %36 = vector.load %arg7[%c0_17, %c0_18] : memref<32x128xbf16, #tpu.memory_space<vmem>>, vector<32x128xbf16>
    %cst_19 = arith.constant dense<0.000000e+00> : vector<8x128xf32>
    %37 = tpu.matmul %35, %36, %cst_19 {dimension_numbers = #tpu.dot_dimension_numbers<[1], [0], [0], [1], [0, 0, 1, 1], [], []>} : vector<8x32xbf16>, vector<32x128xbf16>, vector<8x128xf32> -> vector<8x128xf32>
    %38 = arith.mulf %37, %20 : vector<8x128xf32>
    %39 = arith.truncf %38 : vector<8x128xf32> to vector<8x128xbf16>
    %c0_20 = arith.constant 0 : index
    %c0_21 = arith.constant 0 : index
    %40 = vector.load %arg8[%c0_20, %c0_21] : memref<128x4xbf16, #tpu.memory_space<vmem>>, vector<128x4xbf16>
    %cst_22 = arith.constant dense<0.000000e+00> : vector<8x4xf32>
    %41 = tpu.matmul %39, %40, %cst_22 {dimension_numbers = #tpu.dot_dimension_numbers<[1], [0], [0], [1], [0, 0, 1, 1], [], []>} : vector<8x128xbf16>, vector<128x4xbf16>, vector<8x4xf32> -> vector<8x4xf32>
    %42 = arith.addf %41, %21 : vector<8x4xf32>
    %c0_23 = arith.constant 0 : index
    %c0_24 = arith.constant 0 : index
    %43 = vector.load %arg9[%c0_23, %c0_24] : memref<8x4xf32, #tpu.memory_space<vmem>>, vector<8x4xf32>
    tpu.vector_store %arg9[%c0_23, %c0_24], %42 {strides = array<i32>} : memref<8x4xf32, #tpu.memory_space<vmem>>, vector<8x4xf32>,
    return
  }
  func.func @transform_0(%arg0: i32) -> (i32, i32) {
    %c0_i32 = arith.constant 0 : i32
    %c0_i32_0 = arith.constant 0 : i32
    return %arg0, %c0_i32 : i32, i32
  }
  func.func @transform_1(%arg0: i32) -> (i32, i32) {
    %c0_i32 = arith.constant 0 : i32
    %c0_i32_0 = arith.constant 0 : i32
    %c0_i32_1 = arith.constant 0 : i32
    return %c0_i32, %c0_i32_0 : i32, i32
  }
  func.func @transform_2(%arg0: i32) -> (i32, i32) {
    %c0_i32 = arith.constant 0 : i32
    %c0_i32_0 = arith.constant 0 : i32
    %c0_i32_1 = arith.constant 0 : i32
    return %c0_i32, %c0_i32_0 : i32, i32
  }
  func.func @transform_3(%arg0: i32) -> (i32, i32) {
    %c0_i32 = arith.constant 0 : i32
    %c0_i32_0 = arith.constant 0 : i32
    %c0_i32_1 = arith.constant 0 : i32
    return %c0_i32, %c0_i32_0 : i32, i32
  }
  func.func @transform_4(%arg0: i32) -> (i32, i32) {
    %c0_i32 = arith.constant 0 : i32
    %c0_i32_0 = arith.constant 0 : i32
    %c0_i32_1 = arith.constant 0 : i32
    return %c0_i32, %c0_i32_0 : i32, i32
  }
  func.func @transform_5(%arg0: i32) -> (i32, i32) {
    %c0_i32 = arith.constant 0 : i32
    %c0_i32_0 = arith.constant 0 : i32
    %c0_i32_1 = arith.constant 0 : i32
    return %c0_i32, %c0_i32_0 : i32, i32
  }
  func.func @transform_6(%arg0: i32) -> (i32, i32) {
    %c0_i32 = arith.constant 0 : i32
    %c0_i32_0 = arith.constant 0 : i32
    %c0_i32_1 = arith.constant 0 : i32
    return %c0_i32, %c0_i32_0 : i32, i32
  }
  func.func @transform_7(%arg0: i32) -> (i32, i32) {
    %c0_i32 = arith.constant 0 : i32
    %c0_i32_0 = arith.constant 0 : i32
    %c0_i32_1 = arith.constant 0 : i32
    return %c0_i32, %c0_i32_0 : i32, i32
  }
  func.func @transform_8(%arg0: i32) -> (i32, i32) {
    %c0_i32 = arith.constant 0 : i32
    %c0_i32_0 = arith.constant 0 : i32
    return %arg0, %c0_i32 : i32, i32
  }
}

</mosaic_0001>

<llo_original>
// kernel: tpu_custom_call.1
$region0: #{tpu_custom_call.1}
  #allocation0 [shape = 'u32[]', space=smem, size = 0x4, offset = 0x4, fixed_abs, tag = 'smem constant byte address 0x4 - core index']
  #allocation1 [shape = 'u32[72,128]{1,0:T(1,128)}', space=vmem, size = 0x9000, scoped, tag = 'internal scratch']
  %s0 = inlined_call_operand.vmem [shape: bf16[16,36], index: 0, kind: input, shape index: {}]
  %s1 = inlined_call_operand.vmem [shape: bf16[36,416], index: 1, kind: input, shape index: {}]
  %s2 = inlined_call_operand.vmem [shape: f32[1,416], index: 2, kind: input, shape index: {}]
  %s3 = inlined_call_operand.vmem [shape: bf16[256,260], index: 3, kind: input, shape index: {}]
  %s4 = inlined_call_operand.vmem [shape: f32[1,260], index: 4, kind: input, shape index: {}]
  %s5 = inlined_call_operand.vmem [shape: bf16[128,32], index: 5, kind: input, shape index: {}]
  %s6 = inlined_call_operand.vmem [shape: bf16[32,128], index: 6, kind: input, shape index: {}]
  %s7 = inlined_call_operand.vmem [shape: bf16[128,4], index: 7, kind: input, shape index: {}]
  %s8 = inlined_call_operand.vmem [shape: f32[16,4], index: 8, kind: output, shape index: {}]
  %s9 = sld [smem:[#allocation0]]
  $region65: #{tpu_custom_call.1} parent=0
    _
  %s11 = ssub.s32 1, %s9
  %s12 = scalar_select 0, %s11, %s9
  loop: start=0, step=1, limit=4
  $region2: #{tpu_custom_call.1} parent=0 // loop_pre_header
    _
  $region3: #{tpu_custom_call.1} parent=0 // loop_header
    %s14 = sphi 0, %s18
    %p15 = scmp.ge.s32.totalorder %s14, 4
    %s24 = sphi 0, %s26
    %s27 = sphi 0, %s24
    %s28 = sphi 0, %s27
    %s44 = sphi 0, %s28
    %s48 = sphi 0, %s48
    %s50 = sphi 0, %s48
    %s51 = sphi 0, %s50
    %s65 = sphi 0, %s51
    %s69 = sphi 0, %s69
    %s71 = sphi 0, %s69
    %s72 = sphi 0, %s71
    %s86 = sphi 0, %s72
    %s90 = sphi 0, %s90
    %s92 = sphi 0, %s90
    %s93 = sphi 0, %s92
    %s107 = sphi 0, %s93
    %s111 = sphi 0, %s111
    %s113 = sphi 0, %s111
    %s114 = sphi 0, %s113
    %s128 = sphi 0, %s114
    %s132 = sphi 0, %s132
    %s134 = sphi 0, %s132
    %s135 = sphi 0, %s134
    %s149 = sphi 0, %s135
    %s153 = sphi 0, %s153
    %s155 = sphi 0, %s153
    %s156 = sphi 0, %s155
    %s170 = sphi 0, %s156
    %s174 = sphi 0, %s174
    %s176 = sphi 0, %s174
    %s177 = sphi 0, %s176
    %s191 = sphi 0, %s177
    %s197 = sphi 0, %s199
    %s200 = sphi 0, %s197
    %s201 = sphi 0, %s200
    %s217 = sphi 0, %s201
  $region4: #{tpu_custom_call.1} parent=0 // loop_header_branch
    %17 = sbr.rel (%p15) target = $region8
  $region5: #{tpu_custom_call.1} parent=0 // loop_body
    %s19 = ssub.s32 %s14, 1
    %s20 = ssub.s32 %s14, 2
    %s21 = sadd.s32 %s14, 1
    %s22 = ssub.s32 %s14, %s21
    %p23 = scmp.eq.s32.totalorder %s22, 0
    %s25 = sadd.s32 %s24, 1
    %s26 = scalar_select %p23, %s24, %s25
    %p29 = pneg %p23
    %p30 = scmp.eq.s32.totalorder %s14, 1
    %p31 = por %p29, %p30
    %p32 = scmp.ne.s32.totalorder %s24, %s27
    %p33 = scmp.eq.s32.totalorder %s14, 0
    %p34 = por %p32, %p33
    %p35 = scmp.ne.s32.totalorder %s24, %s27
    %p36 = scmp.eq.s32.totalorder %s19, 1
    %p37 = por %p35, %p36
    %p38 = scmp.ne.s32.totalorder %s27, %s28
    %p39 = scmp.eq.s32.totalorder %s19, 0
    %p40 = por %p38, %p39
    %p41 = scmp.ne.s32.totalorder %s27, %s28
    %p42 = scmp.eq.s32.totalorder %s20, 1
    %p43 = por %p41, %p42
    %p45 = scmp.ne.s32.totalorder %s28, %s44
    %p46 = scmp.eq.s32.totalorder %s20, 0
    %p47 = por %p45, %p46
    %s49 = sadd.s32 %s48, 1
    %p52 = scmp.eq.s32.totalorder %s14, 1
    %p53 = scmp.ne.s32.totalorder %s48, %s50
    %p54 = scmp.eq.s32.totalorder %s14, 0
    %p55 = por %p53, %p54
    %p56 = scmp.ne.s32.totalorder %s48, %s50
    %p57 = scmp.eq.s32.totalorder %s19, 1
    %p58 = por %p56, %p57
    %p59 = scmp.ne.s32.totalorder %s50, %s51
    %p60 = scmp.eq.s32.totalorder %s19, 0
    %p61 = por %p59, %p60
    %p62 = scmp.ne.s32.totalorder %s50, %s51
    %p63 = scmp.eq.s32.totalorder %s20, 1
    %p64 = por %p62, %p63
    %p66 = scmp.ne.s32.totalorder %s51, %s65
    %p67 = scmp.eq.s32.totalorder %s20, 0
    %p68 = por %p66, %p67
    %s70 = sadd.s32 %s69, 1
    %p73 = scmp.eq.s32.totalorder %s14, 1
    %p74 = scmp.ne.s32.totalorder %s69, %s71
    %p75 = scmp.eq.s32.totalorder %s14, 0
    %p76 = por %p74, %p75
    %p77 = scmp.ne.s32.totalorder %s69, %s71
    %p78 = scmp.eq.s32.totalorder %s19, 1
    %p79 = por %p77, %p78
    %p80 = scmp.ne.s32.totalorder %s71, %s72
    %p81 = scmp.eq.s32.totalorder %s19, 0
    %p82 = por %p80, %p81
    %p83 = scmp.ne.s32.totalorder %s71, %s72
    %p84 = scmp.eq.s32.totalorder %s20, 1
    %p85 = por %p83, %p84
    %p87 = scmp.ne.s32.totalorder %s72, %s86
    %p88 = scmp.eq.s32.totalorder %s20, 0
    %p89 = por %p87, %p88
    %s91 = sadd.s32 %s90, 1
    %p94 = scmp.eq.s32.totalorder %s14, 1
    %p95 = scmp.ne.s32.totalorder %s90, %s92
    %p96 = scmp.eq.s32.totalorder %s14, 0
    %p97 = por %p95, %p96
    %p98 = scmp.ne.s32.totalorder %s90, %s92
    %p99 = scmp.eq.s32.totalorder %s19, 1
    %p100 = por %p98, %p99
    %p101 = scmp.ne.s32.totalorder %s92, %s93
    %p102 = scmp.eq.s32.totalorder %s19, 0
    %p103 = por %p101, %p102
    %p104 = scmp.ne.s32.totalorder %s92, %s93
    %p105 = scmp.eq.s32.totalorder %s20, 1
    %p106 = por %p104, %p105
    %p108 = scmp.ne.s32.totalorder %s93, %s107
    %p109 = scmp.eq.s32.totalorder %s20, 0
    %p110 = por %p108, %p109
    %s112 = sadd.s32 %s111, 1
    %p115 = scmp.eq.s32.totalorder %s14, 1
    %p116 = scmp.ne.s32.totalorder %s111, %s113
    %p117 = scmp.eq.s32.totalorder %s14, 0
    %p118 = por %p116, %p117
    %p119 = scmp.ne.s32.totalorder %s111, %s113
    %p120 = scmp.eq.s32.totalorder %s19, 1
    %p121 = por %p119, %p120
    %p122 = scmp.ne.s32.totalorder %s113, %s114
    %p123 = scmp.eq.s32.totalorder %s19, 0
    %p124 = por %p122, %p123
    %p125 = scmp.ne.s32.totalorder %s113, %s114
    %p126 = scmp.eq.s32.totalorder %s20, 1
    %p127 = por %p125, %p126
    %p129 = scmp.ne.s32.totalorder %s114, %s128
    %p130 = scmp.eq.s32.totalorder %s20, 0
    %p131 = por %p129, %p130
    %s133 = sadd.s32 %s132, 1
    %p136 = scmp.eq.s32.totalorder %s14, 1
    %p137 = scmp.ne.s32.totalorder %s132, %s134
    %p138 = scmp.eq.s32.totalorder %s14, 0
    %p139 = por %p137, %p138
    %p140 = scmp.ne.s32.totalorder %s132, %s134
    %p141 = scmp.eq.s32.totalorder %s19, 1
    %p142 = por %p140, %p141
    %p143 = scmp.ne.s32.totalorder %s134, %s135
    %p144 = scmp.eq.s32.totalorder %s19, 0
    %p145 = por %p143, %p144
    %p146 = scmp.ne.s32.totalorder %s134, %s135
    %p147 = scmp.eq.s32.totalorder %s20, 1
    %p148 = por %p146, %p147
    %p150 = scmp.ne.s32.totalorder %s135, %s149
    %p151 = scmp.eq.s32.totalorder %s20, 0
    %p152 = por %p150, %p151
    %s154 = sadd.s32 %s153, 1
    %p157 = scmp.eq.s32.totalorder %s14, 1
    %p158 = scmp.ne.s32.totalorder %s153, %s155
    %p159 = scmp.eq.s32.totalorder %s14, 0
    %p160 = por %p158, %p159
    %p161 = scmp.ne.s32.totalorder %s153, %s155
    %p162 = scmp.eq.s32.totalorder %s19, 1
    %p163 = por %p161, %p162
    %p164 = scmp.ne.s32.totalorder %s155, %s156
    %p165 = scmp.eq.s32.totalorder %s19, 0
    %p166 = por %p164, %p165
    %p167 = scmp.ne.s32.totalorder %s155, %s156
    %p168 = scmp.eq.s32.totalorder %s20, 1
    %p169 = por %p167, %p168
    %p171 = scmp.ne.s32.totalorder %s156, %s170
    %p172 = scmp.eq.s32.totalorder %s20, 0
    %p173 = por %p171, %p172
    %s175 = sadd.s32 %s174, 1
    %p178 = scmp.eq.s32.totalorder %s14, 1
    %p179 = scmp.ne.s32.totalorder %s174, %s176
    %p180 = scmp.eq.s32.totalorder %s14, 0
    %p181 = por %p179, %p180
    %p182 = scmp.ne.s32.totalorder %s174, %s176
    %p183 = scmp.eq.s32.totalorder %s19, 1
    %p184 = por %p182, %p183
    %p185 = scmp.ne.s32.totalorder %s176, %s177
    %p186 = scmp.eq.s32.totalorder %s19, 0
    %p187 = por %p185, %p186
    %p188 = scmp.ne.s32.totalorder %s176, %s177
    %p189 = scmp.eq.s32.totalorder %s20, 1
    %p190 = por %p188, %p189
    %p192 = scmp.ne.s32.totalorder %s177, %s191
    %p193 = scmp.eq.s32.totalorder %s20, 0
    %p194 = por %p192, %p193
    %s195 = ssub.s32 %s14, %s21
    %p196 = scmp.eq.s32.totalorder %s195, 0
    %s198 = sadd.s32 %s197, 1
    %s199 = scalar_select %p196, %s197, %s198
    %p202 = pneg %p196
    %p203 = scmp.eq.s32.totalorder %s14, 1
    %p204 = por %p202, %p203
    %p205 = scmp.ne.s32.totalorder %s197, %s200
    %p206 = scmp.eq.s32.totalorder %s14, 0
    %p207 = por %p205, %p206
    %p208 = scmp.ne.s32.totalorder %s197, %s200
    %p209 = scmp.eq.s32.totalorder %s19, 1
    %p210 = por %p208, %p209
    %p211 = scmp.ne.s32.totalorder %s200, %s201
    %p212 = scmp.eq.s32.totalorder %s19, 0
    %p213 = por %p211, %p212
    %p214 = scmp.ne.s32.totalorder %s200, %s201
    %p215 = scmp.eq.s32.totalorder %s20, 1
    %p216 = por %p214, %p215
    %p218 = scmp.ne.s32.totalorder %s201, %s217
    %p219 = scmp.eq.s32.totalorder %s20, 0
    %p220 = por %p218, %p219
    %p221 = scmp.le.s32.totalorder 1, %s14
    %p222 = scmp.lt.s32.totalorder %s14, 3
    %p223 = pnand %p221, %p222
    %p224 = pneg %p223
    // Predicated region
    $region9: #{tpu_custom_call.1} parent=5 // pred_check
      _
    $region10: #{tpu_custom_call.1} parent=5 // pred_check_branch
      %226 = sbr.rel (%p223) target = $region12
    $region11: #{tpu_custom_call.1} parent=5 // pred_region
      %s227 = ssub.s32 %s14, 1
      // Predicated region
      $region13: #{tpu_custom_call.1} parent=11 // pred_check
        %p228 = pneg %p61
      $region14: #{tpu_custom_call.1} parent=11 // pred_check_branch
        %230 = sbr.rel (%p228) target = $region16
      $region15: #{tpu_custom_call.1} parent=11 // pred_region
        _
      $region16: #{tpu_custom_call.1} parent=11 // pred_fallthru
        _
      // Predicated region
      $region17: #{tpu_custom_call.1} parent=11 // pred_check
        %p231 = pneg %p82
      $region18: #{tpu_custom_call.1} parent=11 // pred_check_branch
        %233 = sbr.rel (%p231) target = $region20
      $region19: #{tpu_custom_call.1} parent=11 // pred_region
        _
      $region20: #{tpu_custom_call.1} parent=11 // pred_fallthru
        _
      // Predicated region
      $region21: #{tpu_custom_call.1} parent=11 // pred_check
        %p234 = pneg %p103
      $region22: #{tpu_custom_call.1} parent=11 // pred_check_branch
        %236 = sbr.rel (%p234) target = $region24
      $region23: #{tpu_custom_call.1} parent=11 // pred_region
        _
      $region24: #{tpu_custom_call.1} parent=11 // pred_fallthru
        _
      // Predicated region
      $region25: #{tpu_custom_call.1} parent=11 // pred_check
        %p237 = pneg %p124
      $region26: #{tpu_custom_call.1} parent=11 // pred_check_branch
        %239 = sbr.rel (%p237) target = $region28
      $region27: #{tpu_custom_call.1} parent=11 // pred_region
        _
      $region28: #{tpu_custom_call.1} parent=11 // pred_fallthru
        _
      // Predicated region
      $region29: #{tpu_custom_call.1} parent=11 // pred_check
        %p240 = pneg %p145
      $region30: #{tpu_custom_call.1} parent=11 // pred_check_branch
        %242 = sbr.rel (%p240) target = $region32
      $region31: #{tpu_custom_call.1} parent=11 // pred_region
        _
      $region32: #{tpu_custom_call.1} parent=11 // pred_fallthru
        _
      // Predicated region
      $region33: #{tpu_custom_call.1} parent=11 // pred_check
        %p243 = pneg %p166
      $region34: #{tpu_custom_call.1} parent=11 // pred_check_branch
        %245 = sbr.rel (%p243) target = $region36
      $region35: #{tpu_custom_call.1} parent=11 // pred_region
        _
      $region36: #{tpu_custom_call.1} parent=11 // pred_fallthru
        _
      // Predicated region
      $region37: #{tpu_custom_call.1} parent=11 // pred_check
        %p246 = pneg %p187
      $region38: #{tpu_custom_call.1} parent=11 // pred_check_branch
        %248 = sbr.rel (%p246) target = $region40
      $region39: #{tpu_custom_call.1} parent=11 // pred_region
        _
      $region40: #{tpu_custom_call.1} parent=11 // pred_fallthru
        _
    $region12: #{tpu_custom_call.1} parent=5 // pred_fallthru
      _
    %p249 = scmp.lt.s32.totalorder %s14, 2
    // Predicated region
    $region41: #{tpu_custom_call.1} parent=5 // pred_check
      %p250 = pneg %p249
    $region42: #{tpu_custom_call.1} parent=5 // pred_check_branch
      %252 = sbr.rel (%p250) target = $region44
    $region43: #{tpu_custom_call.1} parent=5 // pred_region
      // Predicated region
      $region45: #{tpu_custom_call.1} parent=43 // pred_check
        %p253 = pneg %p34
      $region46: #{tpu_custom_call.1} parent=43 // pred_check_branch
        %255 = sbr.rel (%p253) target = $region48
      $region47: #{tpu_custom_call.1} parent=43 // pred_region
        %p256 = scmp.lt.s32.totalorder %s14, 1
        %s257 = scalar_select %p256, %s14, 1
        %s258 = smul.addr %s257, 4
        %s259 = scalar_lea.vmem %s0, %s258
      $region48: #{tpu_custom_call.1} parent=43 // pred_fallthru
        _
    $region44: #{tpu_custom_call.1} parent=5 // pred_fallthru
      _
    %p260 = scmp.le.s32.totalorder 1, %s14
    %p261 = scmp.lt.s32.totalorder %s14, 3
    %p262 = pnand %p260, %p261
    %p263 = pneg %p262
    // Predicated region
    $region49: #{tpu_custom_call.1} parent=5 // pred_check
      _
    $region50: #{tpu_custom_call.1} parent=5 // pred_check_branch
      %265 = sbr.rel (%p262) target = $region52
    $region51: #{tpu_custom_call.1} parent=5 // pred_region
      %s266 = ssub.s32 %s14, 1
      %p267 = scmp.lt.s32.totalorder %s19, 1
      %s268 = scalar_select %p267, %s19, 1
      %s269 = smul.addr %s268, 4
      %s270 = scalar_lea.vmem %s0, %s269
      %p271 = pneg %p40
      %p272 = pneg %p37
      %p273 = pneg %p61
      %p274 = pneg %p58
      %p275 = pneg %p82
      %p276 = pneg %p79
      %p277 = pneg %p103
      %p278 = pneg %p100
      %p279 = pneg %p124
      %p280 = pneg %p121
      %p281 = pneg %p145
      %p282 = pneg %p142
      %p283 = pneg %p166
      %p284 = pneg %p163
      %p285 = pneg %p187
      %p286 = pneg %p184
      %p287 = pneg %p213
      %p288 = pneg %p210
      %p289 = scmp.lt.s32.totalorder %s19, 1
      %s290 = scalar_select %p289, %s19, 1
      %s291 = smul.addr %s290, 8
      %s292 = scalar_lea.vmem %s8, %s291
      %p293 = scmp.lt.s32.totalorder %s19, 1
      %s294 = scalar_select %p293, %s19, 1
      %s295 = smul.addr %s294, 4
      %s296 = scalar_lea.vmem %s0, %s295
      %p297 = scmp.lt.s32.totalorder %s19, 1
      %s298 = scalar_select %p297, %s19, 1
      %s299 = smul.addr %s298, 8
      %s300 = scalar_lea.vmem %s8, %s299
      %v302 = vld [vmem:[%s296] sm:$0xf]
      %v303 = vld [vmem:[%s1] sm:$0xff]
      %v304 = vld [vmem:[%s1 + $0x8] sm:$0xff]
      %v305 = vld [vmem:[%s1 + $0x10] sm:$0xff]
      %v306 = vld [vmem:[%s1 + $0x18] sm:$0xff]
      %v307 = vld [vmem:[%s1 + $0x20] sm:$0xff]
      %v308 = vld [vmem:[%s1 + $0x28] sm:$0xff]
      %v309 = vld [vmem:[%s1 + $0x30] sm:$0xff]
      %v310 = vld [vmem:[%s1 + $0x38] sm:$0xff]
      %v311 = vld [vmem:[%s1 + $0x40] sm:$0x33]
      %v312 = vld [vmem:[%s1 + $0x48] sm:$0x33]
      %v313 = vld [vmem:[%s2] sm:$0xf]
      %v315 = vperm.slane %v313, 0
      %v316 = vperm.slane %v313, 1
      %v317 = vperm.slane %v313, 2
      %v318 = vperm.slane %v313, 3
      %v333 = vunpack.c.l.b16 %v303
      %v334 = vunpack.c.h.b16 %v303
      %v335 = vunpack.c.l.b16 %v304
      %v336 = vunpack.c.h.b16 %v304
      %v337 = vunpack.c.l.b16 %v305
      %v338 = vunpack.c.h.b16 %v305
      %v339 = vunpack.c.l.b16 %v306
      %v340 = vunpack.c.h.b16 %v306
      %v341 = vunpack.c.l.b16 %v307
      %v342 = vunpack.c.h.b16 %v307
      %v343 = vunpack.c.l.b16 %v308
      %v344 = vunpack.c.h.b16 %v308
      %v345 = vunpack.c.l.b16 %v309
      %v346 = vunpack.c.h.b16 %v309
      %v347 = vunpack.c.l.b16 %v310
      %v348 = vunpack.c.h.b16 %v310
      %v349 = vunpack.c.l.b16 %v311
      %v350 = vunpack.c.h.b16 %v311
      %v351 = vunpack.c.l.b16 %v312
      %v352 = vunpack.c.h.b16 %v312
      %v353 = vpack.c.b16 %v337, %v333
      %v354 = vpack.c.b16 %v338, %v334
      %v355 = vpack.c.b16 %v339, %v335
      %v356 = vpack.c.b16 %v340, %v336
      %v357 = vpack.c.b16 %v345, %v341
      %v358 = vpack.c.b16 %v346, %v342
      %v359 = vpack.c.b16 %v347, %v343
      %v360 = vpack.c.b16 %v348, %v344
      %v361 = vpack.c.b16 %v349, %v349
      %v362 = vpack.c.b16 %v350, %v350
      %v363 = vpack.c.b16 %v351, %v351
      %v364 = vpack.c.b16 %v352, %v352
      %vm373 = vcmask 293888
      %v375 = vsel %vm373, %v302, 0
      %vm377 = vcmask 1041408
      %v379 = vsel %vm377, %v361, 0
      %v382 = vsel %vm377, %v362, 0
      %v385 = vsel %vm377, %v363, 0
      %v388 = vsel %vm377, %v364, 0
      %390 = vmatpush.bf16.msra.mxu0 0
      %391 = vmatpush.bf16.msra.mxu0 0
      %392 = vmatpush.bf16.msra.mxu0 0
      %393 = vmatpush.bf16.msra.mxu0 0
      %394 = vmatpush.bf16.msra.mxu0 0
      %395 = vmatpush.bf16.msra.mxu0 %v379
      %396 = vmatpush.bf16.msra.mxu0 %v357
      %397 = vmatpush.bf16.msra.mxu0 %v353
      %398 = vmatmul.bf16.gmra.mxu0 %v375
      %v399 = vpop.f32.mrf.mxu0
      %v400 = vadd.f32 %v315, %v399
      %v401 = vpop.f32.mrf.mxu0
      %402 = vdwg.mxu0
      %403 = vmatpush.bf16.msra.mxu0 0
      %404 = vmatpush.bf16.msra.mxu0 0
      %405 = vmatpush.bf16.msra.mxu0 0
      %406 = vmatpush.bf16.msra.mxu0 0
      %407 = vmatpush.bf16.msra.mxu0 0
      %408 = vmatpush.bf16.msra.mxu0 %v382
      %409 = vmatpush.bf16.msra.mxu0 %v358
      %410 = vmatpush.bf16.msra.mxu0 %v354
      %411 = vmatmul.bf16.gmra.mxu0 %v375
      %v412 = vpop.f32.mrf.mxu0
      %v413 = vadd.f32 %v316, %v412
      %v414 = vpop.f32.mrf.mxu0
      %415 = vdwg.mxu0
      %416 = vmatpush.bf16.msra.mxu0 0
      %417 = vmatpush.bf16.msra.mxu0 0
      %418 = vmatpush.bf16.msra.mxu0 0
      %419 = vmatpush.bf16.msra.mxu0 0
      %420 = vmatpush.bf16.msra.mxu0 0
      %421 = vmatpush.bf16.msra.mxu0 %v385
      %422 = vmatpush.bf16.msra.mxu0 %v359
      %423 = vmatpush.bf16.msra.mxu0 %v355
      %424 = vmatmul.bf16.gmra.mxu0 %v375
      %v425 = vpop.f32.mrf.mxu0
      %v426 = vadd.f32 %v317, %v425
      %v427 = vpop.f32.mrf.mxu0
      %428 = vdwg.mxu0
      %429 = vmatpush.bf16.msra.mxu0 0
      %430 = vmatpush.bf16.msra.mxu0 0
      %431 = vmatpush.bf16.msra.mxu0 0
      %432 = vmatpush.bf16.msra.mxu0 0
      %433 = vmatpush.bf16.msra.mxu0 0
      %434 = vmatpush.bf16.msra.mxu0 %v388
      %435 = vmatpush.bf16.msra.mxu0 %v360
      %436 = vmatpush.bf16.msra.mxu0 %v356
      %437 = vmatmul.bf16.gmra.mxu0 %v375
      %v438 = vpop.f32.mrf.mxu0
      %v439 = vadd.f32 %v318, %v438
      %v440 = vpop.f32.mrf.mxu0
      %441 = vdwg.mxu0
      %v442 = vmax.f32 %v400, 0.0
      %v443 = vmax.f32 %v413, 0.0
      %v444 = vpack.c.bf16 %v442, %v442
      %v445 = vpack.c.bf16 %v443, %v443
      %v446 = vld [vmem:[%s3] sm:$0xff]
      %v447 = vld [vmem:[%s3 + $0x8] sm:$0xf]
      %v448 = vld [vmem:[%s3 + $0xc] sm:$0xff]
      %v449 = vld [vmem:[%s3 + $0x14] sm:$0xf]
      %v450 = vld [vmem:[%s3 + $0x18] sm:$0xff]
      %v451 = vld [vmem:[%s3 + $0x20] sm:$0xf]
      %v452 = vld [vmem:[%s3 + $0x24] sm:$0xff]
      %v453 = vld [vmem:[%s3 + $0x2c] sm:$0xf]
      %v454 = vld [vmem:[%s3 + $0x30] sm:$0xff]
      %v455 = vld [vmem:[%s3 + $0x38] sm:$0xf]
      %v456 = vld [vmem:[%s3 + $0x3c] sm:$0xff]
      %v457 = vld [vmem:[%s3 + $0x44] sm:$0xf]
      %v458 = vld [vmem:[%s3 + $0x48] sm:$0xff]
      %v459 = vld [vmem:[%s3 + $0x50] sm:$0xf]
      %v460 = vld [vmem:[%s3 + $0x54] sm:$0xff]
      %v461 = vld [vmem:[%s3 + $0x5c] sm:$0xf]
      %v462 = vld [vmem:[%s3 + $0x60] sm:$0xff]
      %v463 = vld [vmem:[%s3 + $0x68] sm:$0xf]
      %v464 = vld [vmem:[%s3 + $0x6c] sm:$0xff]
      %v465 = vld [vmem:[%s3 + $0x74] sm:$0xf]
      %v466 = vld [vmem:[%s3 + $0x78] sm:$0xff]
      %v467 = vld [vmem:[%s3 + $0x80] sm:$0xf]
      %v468 = vld [vmem:[%s3 + $0x84] sm:$0xff]
      %v469 = vld [vmem:[%s3 + $0x8c] sm:$0xf]
      %v470 = vld [vmem:[%s3 + $0x90] sm:$0xff]
      %v471 = vld [vmem:[%s3 + $0x98] sm:$0xf]
      %v472 = vld [vmem:[%s3 + $0x9c] sm:$0xff]
      %v473 = vld [vmem:[%s3 + $0xa4] sm:$0xf]
      %v474 = vld [vmem:[%s3 + $0xa8] sm:$0xff]
      %v475 = vld [vmem:[%s3 + $0xb0] sm:$0xf]
      %v476 = vld [vmem:[%s3 + $0xb4] sm:$0xff]
      %v477 = vld [vmem:[%s3 + $0xbc] sm:$0xf]
      %v478 = vld [vmem:[%s3 + $0xc0] sm:$0xff]
      %v479 = vld [vmem:[%s3 + $0xc8] sm:$0xf]
      %v480 = vld [vmem:[%s3 + $0xcc] sm:$0xff]
      %v481 = vld [vmem:[%s3 + $0xd4] sm:$0xf]
      %v482 = vld [vmem:[%s3 + $0xd8] sm:$0xff]
      %v483 = vld [vmem:[%s3 + $0xe0] sm:$0xf]
      %v484 = vld [vmem:[%s3 + $0xe4] sm:$0xff]
      %v485 = vld [vmem:[%s3 + $0xec] sm:$0xf]
      %v486 = vld [vmem:[%s3 + $0xf0] sm:$0xff]
      %v487 = vld [vmem:[%s3 + $0xf8] sm:$0xf]
      %v488 = vld [vmem:[%s3 + $0xfc] sm:$0xff]
      %v489 = vld [vmem:[%s3 + $0x104] sm:$0xf]
      %v490 = vld [vmem:[%s3 + $0x108] sm:$0xff]
      %v491 = vld [vmem:[%s3 + $0x110] sm:$0xf]
      %v492 = vld [vmem:[%s3 + $0x114] sm:$0xff]
      %v493 = vld [vmem:[%s3 + $0x11c] sm:$0xf]
      %v494 = vld [vmem:[%s3 + $0x120] sm:$0xff]
      %v495 = vld [vmem:[%s3 + $0x128] sm:$0xf]
      %v496 = vld [vmem:[%s3 + $0x12c] sm:$0xff]
      %v497 = vld [vmem:[%s3 + $0x134] sm:$0xf]
      %v498 = vld [vmem:[%s3 + $0x138] sm:$0xff]
      %v499 = vld [vmem:[%s3 + $0x140] sm:$0xf]
      %v500 = vld [vmem:[%s3 + $0x144] sm:$0xff]
      %v501 = vld [vmem:[%s3 + $0x14c] sm:$0xf]
      %v502 = vld [vmem:[%s3 + $0x150] sm:$0xff]
      %v503 = vld [vmem:[%s3 + $0x158] sm:$0xf]
      %v504 = vld [vmem:[%s3 + $0x15c] sm:$0xff]
      %v505 = vld [vmem:[%s3 + $0x164] sm:$0xf]
      %v506 = vld [vmem:[%s3 + $0x168] sm:$0xff]
      %v507 = vld [vmem:[%s3 + $0x170] sm:$0xf]
      %v508 = vld [vmem:[%s3 + $0x174] sm:$0xff]
      %v509 = vld [vmem:[%s3 + $0x17c] sm:$0xf]
      %v510 = vld [vmem:[%s4] sm:$0x7]
      %v512 = vperm.slane %v510, 0
      %v513 = vperm.slane %v510, 1
      %v514 = vperm.slane %v510, 2
      %v582 = vunpack.c.l.b16 %v446
      %v583 = vunpack.c.h.b16 %v446
      %v584 = vunpack.c.l.b16 %v447
      %v585 = vunpack.c.l.b16 %v448
      %v586 = vunpack.c.h.b16 %v448
      %v587 = vunpack.c.l.b16 %v449
      %v588 = vunpack.c.l.b16 %v450
      %v589 = vunpack.c.h.b16 %v450
      %v590 = vunpack.c.l.b16 %v451
      %v591 = vunpack.c.l.b16 %v452
      %v592 = vunpack.c.h.b16 %v452
      %v593 = vunpack.c.l.b16 %v453
      %v594 = vunpack.c.l.b16 %v454
      %v595 = vunpack.c.h.b16 %v454
      %v596 = vunpack.c.l.b16 %v455
      %v597 = vunpack.c.l.b16 %v456
      %v598 = vunpack.c.h.b16 %v456
      %v599 = vunpack.c.l.b16 %v457
      %v600 = vunpack.c.l.b16 %v458
      %v601 = vunpack.c.h.b16 %v458
      %v602 = vunpack.c.l.b16 %v459
      %v603 = vunpack.c.l.b16 %v460
      %v604 = vunpack.c.h.b16 %v460
      %v605 = vunpack.c.l.b16 %v461
      %v606 = vunpack.c.l.b16 %v462
      %v607 = vunpack.c.h.b16 %v462
      %v608 = vunpack.c.l.b16 %v463
      %v609 = vunpack.c.l.b16 %v464
      %v610 = vunpack.c.h.b16 %v464
      %v611 = vunpack.c.l.b16 %v465
      %v612 = vunpack.c.l.b16 %v466
      %v613 = vunpack.c.h.b16 %v466
      %v614 = vunpack.c.l.b16 %v467
      %v615 = vunpack.c.l.b16 %v468
      %v616 = vunpack.c.h.b16 %v468
      %v617 = vunpack.c.l.b16 %v469
      %v618 = vunpack.c.l.b16 %v470
      %v619 = vunpack.c.h.b16 %v470
      %v620 = vunpack.c.l.b16 %v471
      %v621 = vunpack.c.l.b16 %v472
      %v622 = vunpack.c.h.b16 %v472
      %v623 = vunpack.c.l.b16 %v473
      %v624 = vunpack.c.l.b16 %v474
      %v625 = vunpack.c.h.b16 %v474
      %v626 = vunpack.c.l.b16 %v475
      %v627 = vunpack.c.l.b16 %v476
      %v628 = vunpack.c.h.b16 %v476
      %v629 = vunpack.c.l.b16 %v477
      %v630 = vunpack.c.l.b16 %v478
      %v631 = vunpack.c.h.b16 %v478
      %v632 = vunpack.c.l.b16 %v479
      %v633 = vunpack.c.l.b16 %v480
      %v634 = vunpack.c.h.b16 %v480
      %v635 = vunpack.c.l.b16 %v481
      %v636 = vunpack.c.l.b16 %v482
      %v637 = vunpack.c.h.b16 %v482
      %v638 = vunpack.c.l.b16 %v483
      %v639 = vunpack.c.l.b16 %v484
      %v640 = vunpack.c.h.b16 %v484
      %v641 = vunpack.c.l.b16 %v485
      %v642 = vunpack.c.l.b16 %v486
      %v643 = vunpack.c.h.b16 %v486
      %v644 = vunpack.c.l.b16 %v487
      %v645 = vunpack.c.l.b16 %v488
      %v646 = vunpack.c.h.b16 %v488
      %v647 = vunpack.c.l.b16 %v489
      %v648 = vunpack.c.l.b16 %v490
      %v649 = vunpack.c.h.b16 %v490
      %v650 = vunpack.c.l.b16 %v491
      %v651 = vunpack.c.l.b16 %v492
      %v652 = vunpack.c.h.b16 %v492
      %v653 = vunpack.c.l.b16 %v493
      %v654 = vunpack.c.l.b16 %v494
      %v655 = vunpack.c.h.b16 %v494
      %v656 = vunpack.c.l.b16 %v495
      %v657 = vunpack.c.l.b16 %v496
      %v658 = vunpack.c.h.b16 %v496
      %v659 = vunpack.c.l.b16 %v497
      %v660 = vunpack.c.l.b16 %v498
      %v661 = vunpack.c.h.b16 %v498
      %v662 = vunpack.c.l.b16 %v499
      %v663 = vunpack.c.l.b16 %v500
      %v664 = vunpack.c.h.b16 %v500
      %v665 = vunpack.c.l.b16 %v501
      %v666 = vunpack.c.l.b16 %v502
      %v667 = vunpack.c.h.b16 %v502
      %v668 = vunpack.c.l.b16 %v503
      %v669 = vunpack.c.l.b16 %v504
      %v670 = vunpack.c.h.b16 %v504
      %v671 = vunpack.c.l.b16 %v505
      %v672 = vunpack.c.l.b16 %v506
      %v673 = vunpack.c.h.b16 %v506
      %v674 = vunpack.c.l.b16 %v507
      %v675 = vunpack.c.l.b16 %v508
      %v676 = vunpack.c.h.b16 %v508
      %v677 = vunpack.c.l.b16 %v509
      %v678 = vpack.c.b16 %v585, %v582
      %v679 = vpack.c.b16 %v586, %v583
      %v680 = vpack.c.b16 %v587, %v584
      %v681 = vpack.c.b16 %v591, %v588
      %v682 = vpack.c.b16 %v592, %v589
      %v683 = vpack.c.b16 %v593, %v590
      %v684 = vpack.c.b16 %v597, %v594
      %v685 = vpack.c.b16 %v598, %v595
      %v686 = vpack.c.b16 %v599, %v596
      %v687 = vpack.c.b16 %v603, %v600
      %v688 = vpack.c.b16 %v604, %v601
      %v689 = vpack.c.b16 %v605, %v602
      %v690 = vpack.c.b16 %v609, %v606
      %v691 = vpack.c.b16 %v610, %v607
      %v692 = vpack.c.b16 %v611, %v608
      %v693 = vpack.c.b16 %v615, %v612
      %v694 = vpack.c.b16 %v616, %v613
      %v695 = vpack.c.b16 %v617, %v614
      %v696 = vpack.c.b16 %v621, %v618
      %v697 = vpack.c.b16 %v622, %v619
      %v698 = vpack.c.b16 %v623, %v620
      %v699 = vpack.c.b16 %v627, %v624
      %v700 = vpack.c.b16 %v628, %v625
      %v701 = vpack.c.b16 %v629, %v626
      %v702 = vpack.c.b16 %v633, %v630
      %v703 = vpack.c.b16 %v634, %v631
      %v704 = vpack.c.b16 %v635, %v632
      %v705 = vpack.c.b16 %v639, %v636
      %v706 = vpack.c.b16 %v640, %v637
      %v707 = vpack.c.b16 %v641, %v638
      %v708 = vpack.c.b16 %v645, %v642
      %v709 = vpack.c.b16 %v646, %v643
      %v710 = vpack.c.b16 %v647, %v644
      %v711 = vpack.c.b16 %v651, %v648
      %v712 = vpack.c.b16 %v652, %v649
      %v713 = vpack.c.b16 %v653, %v650
      %v714 = vpack.c.b16 %v657, %v654
      %v715 = vpack.c.b16 %v658, %v655
      %v716 = vpack.c.b16 %v659, %v656
      %v717 = vpack.c.b16 %v663, %v660
      %v718 = vpack.c.b16 %v664, %v661
      %v719 = vpack.c.b16 %v665, %v662
      %v720 = vpack.c.b16 %v669, %v666
      %v721 = vpack.c.b16 %v670, %v667
      %v722 = vpack.c.b16 %v671, %v668
      %v723 = vpack.c.b16 %v675, %v672
      %v724 = vpack.c.b16 %v676, %v673
      %v725 = vpack.c.b16 %v677, %v674
      %774 = vmatpush.bf16.msra.mxu0 %v699
      %775 = vmatpush.bf16.msra.mxu0 %v696
      %776 = vmatpush.bf16.msra.mxu0 %v693
      %777 = vmatpush.bf16.msra.mxu0 %v690
      %778 = vmatpush.bf16.msra.mxu0 %v687
      %779 = vmatpush.bf16.msra.mxu0 %v684
      %780 = vmatpush.bf16.msra.mxu0 %v681
      %781 = vmatpush.bf16.msra.mxu0 %v678
      %782 = vmatmul.bf16.gmra.mxu0 %v444
      %v783 = vpop.f32.mrf.mxu0
      %v784 = vadd.f32 %v512, %v783
      %v785 = vpop.f32.mrf.mxu0
      %786 = vdwg.mxu0
      %787 = vmatpush.bf16.msra.mxu0 %v723
      %788 = vmatpush.bf16.msra.mxu0 %v720
      %789 = vmatpush.bf16.msra.mxu0 %v717
      %790 = vmatpush.bf16.msra.mxu0 %v714
      %791 = vmatpush.bf16.msra.mxu0 %v711
      %792 = vmatpush.bf16.msra.mxu0 %v708
      %793 = vmatpush.bf16.msra.mxu0 %v705
      %794 = vmatpush.bf16.msra.mxu0 %v702
      %795 = vmatmul.bf16.gmra.mxu0 %v445
      %v796 = vpop.f32.mrf.mxu0
      %v797 = vadd.f32 %v784, %v796
      %v798 = vpop.f32.mrf.mxu0
      %799 = vdwg.mxu0
      %800 = vmatpush.bf16.msra.mxu0 %v700
      %801 = vmatpush.bf16.msra.mxu0 %v697
      %802 = vmatpush.bf16.msra.mxu0 %v694
      %803 = vmatpush.bf16.msra.mxu0 %v691
      %804 = vmatpush.bf16.msra.mxu0 %v688
      %805 = vmatpush.bf16.msra.mxu0 %v685
      %806 = vmatpush.bf16.msra.mxu0 %v682
      %807 = vmatpush.bf16.msra.mxu0 %v679
      %808 = vmatmul.bf16.gmra.mxu0 %v444
      %v809 = vpop.f32.mrf.mxu0
      %v810 = vadd.f32 %v513, %v809
      %v811 = vpop.f32.mrf.mxu0
      %812 = vdwg.mxu0
      %813 = vmatpush.bf16.msra.mxu0 %v724
      %814 = vmatpush.bf16.msra.mxu0 %v721
      %815 = vmatpush.bf16.msra.mxu0 %v718
      %816 = vmatpush.bf16.msra.mxu0 %v715
      %817 = vmatpush.bf16.msra.mxu0 %v712
      %818 = vmatpush.bf16.msra.mxu0 %v709
      %819 = vmatpush.bf16.msra.mxu0 %v706
      %820 = vmatpush.bf16.msra.mxu0 %v703
      %821 = vmatmul.bf16.gmra.mxu0 %v445
      %v822 = vpop.f32.mrf.mxu0
      %v823 = vadd.f32 %v810, %v822
      %v824 = vpop.f32.mrf.mxu0
      %825 = vdwg.mxu0
      %826 = vmatpush.bf16.msra.mxu0 %v701
      %827 = vmatpush.bf16.msra.mxu0 %v698
      %828 = vmatpush.bf16.msra.mxu0 %v695
      %829 = vmatpush.bf16.msra.mxu0 %v692
      %830 = vmatpush.bf16.msra.mxu0 %v689
      %831 = vmatpush.bf16.msra.mxu0 %v686
      %832 = vmatpush.bf16.msra.mxu0 %v683
      %833 = vmatpush.bf16.msra.mxu0 %v680
      %834 = vmatmul.bf16.gmra.mxu0 %v444
      %v835 = vpop.f32.mrf.mxu0
      %v836 = vadd.f32 %v514, %v835
      %v837 = vpop.f32.mrf.mxu0
      %838 = vdwg.mxu0
      %839 = vmatpush.bf16.msra.mxu0 %v725
      %840 = vmatpush.bf16.msra.mxu0 %v722
      %841 = vmatpush.bf16.msra.mxu0 %v719
      %842 = vmatpush.bf16.msra.mxu0 %v716
      %843 = vmatpush.bf16.msra.mxu0 %v713
      %844 = vmatpush.bf16.msra.mxu0 %v710
      %845 = vmatpush.bf16.msra.mxu0 %v707
      %846 = vmatpush.bf16.msra.mxu0 %v704
      %847 = vmatmul.bf16.gmra.mxu0 %v445
      %v848 = vpop.f32.mrf.mxu0
      %v849 = vadd.f32 %v836, %v848
      %v850 = vpop.f32.mrf.mxu0
      %851 = vdwg.mxu0
      %v852 = vand.u32 2147483647, %v797
      %v853 = vand.u32 2147483647, %v823
      %v854 = vmul.f32 %v426, %v852
      %v855 = vpack.c.bf16 %v854, %v854
      %v856 = vld [vmem:[%s5] sm:$0xf]
      %v857 = vld [vmem:[%s5 + $0x4] sm:$0xf]
      %v858 = vld [vmem:[%s5 + $0x8] sm:$0xf]
      %v859 = vld [vmem:[%s5 + $0xc] sm:$0xf]
      %v860 = vld [vmem:[%s5 + $0x10] sm:$0xf]
      %v861 = vld [vmem:[%s5 + $0x14] sm:$0xf]
      %v862 = vld [vmem:[%s5 + $0x18] sm:$0xf]
      %v863 = vld [vmem:[%s5 + $0x1c] sm:$0xf]
      %v864 = vld [vmem:[%s5 + $0x20] sm:$0xf]
      %v865 = vld [vmem:[%s5 + $0x24] sm:$0xf]
      %v866 = vld [vmem:[%s5 + $0x28] sm:$0xf]
      %v867 = vld [vmem:[%s5 + $0x2c] sm:$0xf]
      %v868 = vld [vmem:[%s5 + $0x30] sm:$0xf]
      %v869 = vld [vmem:[%s5 + $0x34] sm:$0xf]
      %v870 = vld [vmem:[%s5 + $0x38] sm:$0xf]
      %v871 = vld [vmem:[%s5 + $0x3c] sm:$0xf]
      %v888 = vunpack.c.l.b16 %v856
      %v889 = vunpack.c.l.b16 %v857
      %v890 = vunpack.c.l.b16 %v858
      %v891 = vunpack.c.l.b16 %v859
      %v892 = vunpack.c.l.b16 %v860
      %v893 = vunpack.c.l.b16 %v861
      %v894 = vunpack.c.l.b16 %v862
      %v895 = vunpack.c.l.b16 %v863
      %v896 = vunpack.c.l.b16 %v864
      %v897 = vunpack.c.l.b16 %v865
      %v898 = vunpack.c.l.b16 %v866
      %v899 = vunpack.c.l.b16 %v867
      %v900 = vunpack.c.l.b16 %v868
      %v901 = vunpack.c.l.b16 %v869
      %v902 = vunpack.c.l.b16 %v870
      %v903 = vunpack.c.l.b16 %v871
      %v904 = vpack.c.b16 %v889, %v888
      %v905 = vpack.c.b16 %v891, %v890
      %v906 = vpack.c.b16 %v893, %v892
      %v907 = vpack.c.b16 %v895, %v894
      %v908 = vpack.c.b16 %v897, %v896
      %v909 = vpack.c.b16 %v899, %v898
      %v910 = vpack.c.b16 %v901, %v900
      %v911 = vpack.c.b16 %v903, %v902
      %920 = vmatpush.bf16.msra.mxu0 %v911
      %921 = vmatpush.bf16.msra.mxu0 %v910
      %922 = vmatpush.bf16.msra.mxu0 %v909
      %923 = vmatpush.bf16.msra.mxu0 %v908
      %924 = vmatpush.bf16.msra.mxu0 %v907
      %925 = vmatpush.bf16.msra.mxu0 %v906
      %926 = vmatpush.bf16.msra.mxu0 %v905
      %927 = vmatpush.bf16.msra.mxu0 %v904
      %928 = vmatmul.bf16.gmra.mxu0 %v855
      %v929 = vpop.f32.mrf.mxu0
      %v930 = vadd.f32 %v439, %v929
      %v931 = vpop.f32.mrf.mxu0
      %932 = vdwg.mxu0
      %v933 = vmin.f32 %v930, 0.0
      %vm934 = vcmp.gt.f32.partialorder %v930, 0.0
      %v935 = vmul.f32 %v933, 1.442695
      %v936 = vpow.pop %v935
      %v937 = vsub.f32 %v936, 1.0
      %v938 = vsel %vm934, %v930, %v937
      %v939 = vpack.c.bf16 %v938, %v938
      %v940 = vld [vmem:[%s6] sm:$0xf]
      %v941 = vld [vmem:[%s6 + $0x4] sm:$0xf]
      %v942 = vld [vmem:[%s6 + $0x8] sm:$0xf]
      %v943 = vld [vmem:[%s6 + $0xc] sm:$0xf]
      %v948 = vunpack.c.l.b16 %v940
      %v949 = vunpack.c.l.b16 %v941
      %v950 = vunpack.c.l.b16 %v942
      %v951 = vunpack.c.l.b16 %v943
      %v952 = vpack.c.b16 %v949, %v948
      %v953 = vpack.c.b16 %v951, %v950
      %vm956 = vcmask 261120
      %v958 = vsel %vm956, %v939, 0
      %960 = vmatpush.bf16.msra.mxu0 0
      %961 = vmatpush.bf16.msra.mxu0 0
      %962 = vmatpush.bf16.msra.mxu0 0
      %963 = vmatpush.bf16.msra.mxu0 0
      %964 = vmatpush.bf16.msra.mxu0 0
      %965 = vmatpush.bf16.msra.mxu0 0
      %966 = vmatpush.bf16.msra.mxu0 %v953
      %967 = vmatpush.bf16.msra.mxu0 %v952
      %968 = vmatmul.bf16.gmra.mxu0 %v958
      %v969 = vpop.f32.mrf.mxu0
      %v970 = vadd.f32 0.0, %v969
      %v971 = vpop.f32.mrf.mxu0
      %972 = vdwg.mxu0
      %v973 = vmul.f32 %v970, %v853
      %v974 = vpack.c.bf16 %v973, %v973
      %v975 = vld [vmem:[%s7] sm:$0xf]
      %v976 = vld [vmem:[%s7 + $0x4] sm:$0xf]
      %v977 = vld [vmem:[%s7 + $0x8] sm:$0xf]
      %v978 = vld [vmem:[%s7 + $0xc] sm:$0xf]
      %v979 = vld [vmem:[%s7 + $0x10] sm:$0xf]
      %v980 = vld [vmem:[%s7 + $0x14] sm:$0xf]
      %v981 = vld [vmem:[%s7 + $0x18] sm:$0xf]
      %v982 = vld [vmem:[%s7 + $0x1c] sm:$0xf]
      %v983 = vld [vmem:[%s7 + $0x20] sm:$0xf]
      %v984 = vld [vmem:[%s7 + $0x24] sm:$0xf]
      %v985 = vld [vmem:[%s7 + $0x28] sm:$0xf]
      %v986 = vld [vmem:[%s7 + $0x2c] sm:$0xf]
      %v987 = vld [vmem:[%s7 + $0x30] sm:$0xf]
      %v988 = vld [vmem:[%s7 + $0x34] sm:$0xf]
      %v989 = vld [vmem:[%s7 + $0x38] sm:$0xf]
      %v990 = vld [vmem:[%s7 + $0x3c] sm:$0xf]
      %v1007 = vunpack.c.l.b16 %v975
      %v1008 = vunpack.c.l.b16 %v976
      %v1009 = vunpack.c.l.b16 %v977
      %v1010 = vunpack.c.l.b16 %v978
      %v1011 = vunpack.c.l.b16 %v979
      %v1012 = vunpack.c.l.b16 %v980
      %v1013 = vunpack.c.l.b16 %v981
      %v1014 = vunpack.c.l.b16 %v982
      %v1015 = vunpack.c.l.b16 %v983
      %v1016 = vunpack.c.l.b16 %v984
      %v1017 = vunpack.c.l.b16 %v985
      %v1018 = vunpack.c.l.b16 %v986
      %v1019 = vunpack.c.l.b16 %v987
      %v1020 = vunpack.c.l.b16 %v988
      %v1021 = vunpack.c.l.b16 %v989
      %v1022 = vunpack.c.l.b16 %v990
      %v1023 = vpack.c.b16 %v1008, %v1007
      %v1024 = vpack.c.b16 %v1010, %v1009
      %v1025 = vpack.c.b16 %v1012, %v1011
      %v1026 = vpack.c.b16 %v1014, %v1013
      %v1027 = vpack.c.b16 %v1016, %v1015
      %v1028 = vpack.c.b16 %v1018, %v1017
      %v1029 = vpack.c.b16 %v1020, %v1019
      %v1030 = vpack.c.b16 %v1022, %v1021
      %1039 = vmatpush.bf16.msra.mxu0 %v1030
      %1040 = vmatpush.bf16.msra.mxu0 %v1029
      %1041 = vmatpush.bf16.msra.mxu0 %v1028
      %1042 = vmatpush.bf16.msra.mxu0 %v1027
      %1043 = vmatpush.bf16.msra.mxu0 %v1026
      %1044 = vmatpush.bf16.msra.mxu0 %v1025
      %1045 = vmatpush.bf16.msra.mxu0 %v1024
      %1046 = vmatpush.bf16.msra.mxu0 %v1023
      %1047 = vmatmul.bf16.gmra.mxu0 %v974
      %v1048 = vpop.f32.mrf.mxu0
      %v1049 = vadd.f32 %v849, %v1048
      %v1050 = vpop.f32.mrf.mxu0
      %1051 = vdwg.mxu0
      %vm1052 = vcmask 31744
      %1053 = vst.msk [vmem:[%s300] sm:$0xff] %vm1052, %v1049
      %p1054 = scmp.lt.s32.totalorder %s19, 1
      %s1055 = scalar_select %p1054, %s19, 1
      %s1056 = smul.addr %s1055, 8
      %s1057 = scalar_lea.vmem %s8, %s1056
      // Predicated region
      $region53: #{tpu_custom_call.1} parent=51 // pred_check
        %p1058 = pneg %p210
      $region54: #{tpu_custom_call.1} parent=51 // pred_check_branch
        %1060 = sbr.rel (%p1058) target = $region56
      $region55: #{tpu_custom_call.1} parent=51 // pred_region
        _
      $region56: #{tpu_custom_call.1} parent=51 // pred_fallthru
        _
    $region52: #{tpu_custom_call.1} parent=5 // pred_fallthru
      _
    %p1061 = scmp.le.s32.totalorder 2, %s14
    // Predicated region
    $region57: #{tpu_custom_call.1} parent=5 // pred_check
      %p1062 = pneg %p1061
    $region58: #{tpu_custom_call.1} parent=5 // pred_check_branch
      %1064 = sbr.rel (%p1062) target = $region60
    $region59: #{tpu_custom_call.1} parent=5 // pred_region
      %s1065 = ssub.s32 %s14, 2
      // Predicated region
      $region61: #{tpu_custom_call.1} parent=59 // pred_check
        %p1066 = pneg %p216
      $region62: #{tpu_custom_call.1} parent=59 // pred_check_branch
        %1068 = sbr.rel (%p1066) target = $region64
      $region63: #{tpu_custom_call.1} parent=59 // pred_region
        %p1069 = scmp.lt.s32.totalorder %s20, 1
        %s1070 = scalar_select %p1069, %s20, 1
        %s1071 = smul.addr %s1070, 8
        %s1072 = scalar_lea.vmem %s8, %s1071
      $region64: #{tpu_custom_call.1} parent=59 // pred_fallthru
        _
    $region60: #{tpu_custom_call.1} parent=5 // pred_fallthru
      _
  $region6: #{tpu_custom_call.1} parent=0 // loop_footer
    %s18 = sadd.s32 1, %s14
  $region7: #{tpu_custom_call.1} parent=0 // loop_footer_branch
    %13 = sbr.rel target = $region3
  $region8: #{tpu_custom_call.1} parent=0 // loop_exit
    _

</llo_original>
